<compile_context>
chip_gen: v7x
topology: tpu7x:2x2x1
jax: 0.10.0
libtpu: 0.0.40
codegen_flags: <defaults>
</compile_context>

<pallas_src>
import functools

import jax
import jax.numpy as jnp
from jax import lax
from jax.experimental import pallas as pl
from jax.experimental.pallas import tpu as pltpu


def _dice_sums_kernel(x_ref, t_ref, inter_ref, st_ref, spp_ref, *,
                      hw, rows_tile, steps_per_chunk, masked):
    """Per-tile softmax + per-class lane-dense partial sums.

    x_ref:     (C, R, 128) logits tile (pixels packed sublane x lane)
    t_ref:     (R, 128)    integer labels tile
    inter_ref: (C, A, 128) f32 accumulator for sum(p * onehot(t))
    st_ref:    (C, A, 128) f32 accumulator for sum(onehot(t))
    spp_ref:   (C, A, 128) f32 accumulator for sum(p * p)
    (A = 8 when R is a multiple of 8, else A = R.)
    """
    x = x_ref[...]
    if x.dtype != jnp.float32:
        x = x.astype(jnp.float32)
    c, r, _ = x.shape

    t = t_ref[...]
    if t.dtype != jnp.int32:
        t = t.astype(jnp.int32)                               # (R, 128)

    if masked:
        # Global pixel index of each (row, lane) position of this tile, built
        # from the UNclamped grid step so duplicated/boundary blocks mask to
        # zero contribution.
        gstep = pl.program_id(1) * steps_per_chunk + pl.program_id(2)
        row0 = gstep * rows_tile * 128
        rid = lax.broadcasted_iota(jnp.int32, (r, 128), 0)
        lid = lax.broadcasted_iota(jnp.int32, (r, 128), 1)
        valid = (row0 + rid * 128 + lid) < hw                 # (R, 128) bool
        # Zero logits first so garbage in boundary blocks can't make NaN/Inf.
        x = jnp.where(valid[None], x, 0.0)

    # Stable softmax over the class axis (leading axis -> elementwise VPU ops).
    mx = jnp.max(x, axis=0, keepdims=True)                    # (1, R, 128)
    e = jnp.exp(x - mx)                                       # (C, R, 128)
    denom = jnp.sum(e, axis=0, keepdims=True)                 # (1, R, 128)
    rcp = pl.reciprocal(denom, approx=True)                   # EUP slot
    rcp = rcp * (2.0 - denom * rcp)                           # Newton -> ~f32
    p = e * rcp                                               # (C, R, 128)

    cls = lax.broadcasted_iota(jnp.int32, (c, 1, 1), 0)       # (C, 1, 1)
    onehot_b = t[None] == cls                                 # (C, R, 128) bool
    if masked:
        onehot_b = jnp.logical_and(onehot_b, valid[None])
        p = jnp.where(valid[None], p, 0.0)

    onehot = onehot_b.astype(jnp.float32)
    inter = jnp.where(onehot_b, p, 0.0)
    spp = p * p

    acc_rows = inter_ref.shape[1]

    def fold(v):
        # (C, R, 128) -> (C, acc_rows, 128) via elementwise vreg adds
        # (reshape respects the (8,128) tiling, reduction is over a leading
        # axis -> pure VPU, no XLU, lane-dense result).
        if r == acc_rows:
            return v
        return jnp.sum(v.reshape(c, r // acc_rows, acc_rows, 128), axis=1)

    @pl.when(pl.program_id(2) == 0)
    def _():
        inter_ref[...] = jnp.zeros_like(inter_ref)
        st_ref[...] = jnp.zeros_like(st_ref)
        spp_ref[...] = jnp.zeros_like(spp_ref)

    inter_ref[...] += fold(inter)
    st_ref[...] += fold(onehot)
    spp_ref[...] += fold(spp)


def _plan_rows_tile(rows_total, c, *, max_bytes=8 << 20, max_rows=512):
    """Rows of 128 pixels per grid step.

    Either the full (tiny) extent, or a multiple of 8 capped so the
    double-buffered logits+labels input windows stay well under the scoped
    VMEM default on every generation, and sized so there are >= 2 row blocks
    (the chunk axis can then feed both v7x TensorCores even at batch 1).
    """
    if rows_total <= 8:
        return rows_total
    per_row = 2 * (c + 1) * 128 * 4            # 2 buffers * (C f32 + 1 i32)
    cap = max(8, min(max_rows, (max_bytes // per_row) // 8 * 8))
    if rows_total < 16:
        return 8
    half = (((rows_total + 1) // 2) + 7) // 8 * 8
    return min(cap, half)


def _dice_sums(x4, t4, *, hw, rows_tile, acc_rows, num_chunks, steps_per_chunk,
               total_blocks, masked):
    n, c, rows_total, _ = x4.shape
    last_block = total_blocks - 1

    def row_block(ch, s):
        return jnp.minimum(ch * steps_per_chunk + s, last_block)

    x_spec = pl.BlockSpec((None, c, rows_tile, 128),
                          lambda ni, ch, s: (ni, 0, row_block(ch, s), 0))
    t_spec = pl.BlockSpec((None, None, rows_tile, 128),
                          lambda ni, ch, s: (ni, 0, row_block(ch, s), 0))
    acc_spec = pl.BlockSpec((None, None, c, acc_rows, 128),
                            lambda ni, ch, s: (ni, ch, 0, 0, 0))
    out = jax.ShapeDtypeStruct((n, num_chunks, c, acc_rows, 128), jnp.float32)

    kernel = functools.partial(_dice_sums_kernel, hw=hw, rows_tile=rows_tile,
                               steps_per_chunk=steps_per_chunk, masked=masked)
    return pl.pallas_call(
        kernel,
        out_shape=(out, out, out),
        grid_spec=pltpu.PrefetchScalarGridSpec(
            num_scalar_prefetch=0,
            grid=(n, num_chunks, steps_per_chunk),
            in_specs=[x_spec, t_spec],
            out_specs=(acc_spec, acc_spec, acc_spec),
        ),
        compiler_params=pltpu.CompilerParams(
            dimension_semantics=("parallel", "parallel", "arbitrary"),
            vmem_limit_bytes=32 * 1024 * 1024,
        ),
    )(x4, t4)


@functools.partial(jax.jit, static_argnames=("n_classes",))
def dice_loss_forward(inputs, target, n_classes, weight=None):
    """Equivalent of DiceLoss(n_classes)(inputs, target) with softmax=True,
    one_hot=True.

    inputs: (N, C, H, W) float (f32 or bf16) logits
    target: (N, 1, H, W) integer class labels in [0, C)
    weight: optional (C,) per-class weights (defaults to ones)
    """
    n, c, h, w = inputs.shape
    assert c == n_classes
    hw = h * w

    # Free, contiguous reshapes -- no transpose, no extra HBM copy of logits.
    x3 = inputs.reshape(n, c, hw)
    t3 = target.reshape(n, 1, hw)
    if not jnp.issubdtype(t3.dtype, jnp.integer):
        t3 = t3.astype(jnp.int32)

    # Only a sub-128-column remainder is ever padded; everything else is
    # handled by the in-kernel pixel-index mask.
    hw128 = (hw + 127) // 128 * 128
    if hw128 != hw:
        x3 = jnp.pad(x3, ((0, 0), (0, 0), (0, hw128 - hw)))
        t3 = jnp.pad(t3, ((0, 0), (0, 0), (0, hw128 - hw)))
    rows_total = hw128 // 128
    x4 = x3.reshape(n, c, rows_total, 128)
    t4 = t3.reshape(n, 1, rows_total, 128)

    rows_tile = _plan_rows_tile(rows_total, c)
    acc_rows = 8 if rows_tile % 8 == 0 else rows_tile
    total_blocks = -(-rows_total // rows_tile)
    num_chunks = 2 if total_blocks >= 2 else 1
    steps_per_chunk = -(-total_blocks // num_chunks)
    masked = num_chunks * steps_per_chunk * rows_tile * 128 != hw

    inter, st, spp = _dice_sums(
        x4, t4, hw=hw, rows_tile=rows_tile, acc_rows=acc_rows,
        num_chunks=num_chunks, steps_per_chunk=steps_per_chunk,
        total_blocks=total_blocks, masked=masked)

    # Tiny (N, chunks, C, acc_rows, 128) partials -> (C,) scalars in JAX.
    intersect = jnp.sum(inter, axis=(0, 1, 3, 4))
    sum_t = jnp.sum(st, axis=(0, 1, 3, 4))
    sum_pp = jnp.sum(spp, axis=(0, 1, 3, 4))

    smooth = 0.0001
    dice = (2.0 * intersect + smooth) / (sum_t + sum_pp + smooth)
    class_loss = 1.0 - dice                                   # (C,)

    if weight is None:
        weight = jnp.ones((n_classes,), jnp.float32)
    else:
        weight = jnp.asarray(weight, jnp.float32)
    # PyTorch loop runs over classes 1 .. n_classes-1 (class 0 excluded).
    loss = jnp.sum(class_loss[1:] * weight[1:])
    return loss / (n_classes - 1.0)


def _reference_forward(inputs, target, n_classes):
    """Pure-JAX reference matching the PyTorch module."""
    p = jax.nn.softmax(inputs, axis=1)
    t1h = jax.nn.one_hot(target[:, 0], n_classes, axis=1, dtype=jnp.float32)
    smooth = 0.0001
    loss = 0.0
    for i in range(1, n_classes):
        pi, ti = p[:, i], t1h[:, i]
        inter = jnp.sum(pi * ti)
        dice = (2.0 * inter + smooth) / (jnp.sum(ti) + jnp.sum(pi * pi) + smooth)
        loss += 1.0 - dice
    return loss / (n_classes - 1.0)


if __name__ == "__main__":
    key = jax.random.PRNGKey(0)
    keys = jax.random.split(key, 8)

    def _check(name, inputs, target, n_classes):
        loss = jax.block_until_ready(
            dice_loss_forward(inputs, target, n_classes=n_classes))
        ref = jax.block_until_ready(
            _reference_forward(inputs.astype(jnp.float32), target, n_classes))
        assert jnp.allclose(loss, ref, atol=2e-5, rtol=2e-5), (name, loss, ref)

    # 1) Primary small NCHW case (HW multiple of 128, single resident block).
    N, C, H, W = 2, 4, 16, 16
    x = jax.random.normal(keys[0], (N, C, H, W), jnp.float32)
    t = jax.random.randint(keys[1], (N, 1, H, W), 0, C, dtype=jnp.int32)
    _check("16x16", x, t, C)

    # 2) HW not a multiple of 128 (sub-128 remainder pad + pixel-index mask).
    x = jax.random.normal(keys[2], (2, 4, 10, 10), jnp.float32)
    t = jax.random.randint(keys[3], (2, 1, 10, 10), 0, 4, dtype=jnp.int32)
    _check("10x10", x, t, 4)

    # 3) Batch 1, multiple row blocks: exercises the chunk (v7x) axis and the
    #    sublane-fold accumulation path.
    x = jax.random.normal(keys[4], (1, 4, 64, 64), jnp.float32)
    t = jax.random.randint(keys[5], (1, 1, 64, 64), 0, 4, dtype=jnp.int32)
    _check("64x64", x, t, 4)

    # 4) Ragged rows with a partial boundary block + bf16 logits.
    x = jax.random.normal(keys[6], (2, 4, 40, 40), jnp.float32).astype(jnp.bfloat16)
    t = jax.random.randint(keys[7], (2, 1, 40, 40), 0, 4, dtype=jnp.int32)
    _check("40x40-bf16", x, t, 4)

    print("KERNEL_OK")
</pallas_src>

<mosaic_0001>
module attributes {stable_mosaic.version = 11 : i64} {
  func.func @_dice_sums_kernel(%arg0: i32, %arg1: i32, %arg2: i32, %arg3: memref<1x4x2x128xf32, #tpu.memory_space<vmem>>, %arg4: memref<1x1x2x128xi32, #tpu.memory_space<vmem>>, %arg5: memref<1x1x4x2x128xf32, #tpu.memory_space<vmem>>, %arg6: memref<1x1x4x2x128xf32, #tpu.memory_space<vmem>>, %arg7: memref<1x1x4x2x128xf32, #tpu.memory_space<vmem>>) attributes {dimension_semantics = [#tpu.dimension_semantics<parallel>, #tpu.dimension_semantics<parallel>, #tpu.dimension_semantics<arbitrary>], iteration_bounds = array<i64: 2, 1, 1>, scalar_prefetch = 0 : i64, scratch_operands = 0 : i64, tpu.core_type = #tpu.core_type<tc>, window_params = [{transform_indices = @transform_0, window_bounds = array<i64: 1, 4, 2, 128>}, {transform_indices = @transform_1, window_bounds = array<i64: 1, 1, 2, 128>}, {transform_indices = @transform_2, window_bounds = array<i64: 1, 1, 4, 2, 128>}, {transform_indices = @transform_3, window_bounds = array<i64: 1, 1, 4, 2, 128>}, {transform_indices = @transform_4, window_bounds = array<i64: 1, 1, 4, 2, 128>}]} {
    %c0 = arith.constant 0 : index
    %c0_0 = arith.constant 0 : index
    %c0_1 = arith.constant 0 : index
    %c0_2 = arith.constant 0 : index
    %0 = vector.load %arg3[%c0, %c0_0, %c0_1, %c0_2] : memref<1x4x2x128xf32, #tpu.memory_space<vmem>>, vector<1x4x2x128xf32>
    %1 = vector.shape_cast %0 : vector<1x4x2x128xf32> to vector<4x2x128xf32>
    %c0_3 = arith.constant 0 : index
    %c0_4 = arith.constant 0 : index
    %c0_5 = arith.constant 0 : index
    %c0_6 = arith.constant 0 : index
    %2 = vector.load %arg4[%c0_3, %c0_4, %c0_5, %c0_6] : memref<1x1x2x128xi32, #tpu.memory_space<vmem>>, vector<1x1x2x128xi32>
    %3 = vector.shape_cast %2 : vector<1x1x2x128xi32> to vector<2x128xi32>
    %cst = arith.constant dense<0xFF800000> : vector<2x128xf32>
    %4 = vector.multi_reduction <maximumf>, %1, %cst [0] : vector<4x2x128xf32> to vector<2x128xf32>
    %5 = vector.shape_cast %4 : vector<2x128xf32> to vector<1x2x128xf32>
    %6 = vector.broadcast %5 : vector<1x2x128xf32> to vector<4x2x128xf32>
    %7 = arith.subf %1, %6 : vector<4x2x128xf32>
    %8 = math.exp %7 : vector<4x2x128xf32>
    %cst_7 = arith.constant dense<0.000000e+00> : vector<2x128xf32>
    %9 = vector.multi_reduction <add>, %8, %cst_7 [0] : vector<4x2x128xf32> to vector<2x128xf32>
    %10 = vector.shape_cast %9 : vector<2x128xf32> to vector<1x2x128xf32>
    %11 = tpu.reciprocal %10 {approx = true} : vector<1x2x128xf32> -> vector<1x2x128xf32>
    %12 = arith.mulf %10, %11 : vector<1x2x128xf32>
    %cst_8 = arith.constant 2.000000e+00 : f32
    %13 = vector.broadcast %cst_8 : f32 to vector<1x2x128xf32>
    %14 = arith.subf %13, %12 : vector<1x2x128xf32>
    %15 = arith.mulf %11, %14 : vector<1x2x128xf32>
    %16 = vector.broadcast %15 : vector<1x2x128xf32> to vector<4x2x128xf32>
    %17 = arith.mulf %8, %16 : vector<4x2x128xf32>
    %18 = tpu.iota {dimensions = array<i32: 0>} : vector<4x1x1xi32>
    %19 = vector.shape_cast %3 : vector<2x128xi32> to vector<1x2x128xi32>
    %20 = vector.broadcast %19 : vector<1x2x128xi32> to vector<4x2x128xi32>
    %21 = vector.broadcast %18 : vector<4x1x1xi32> to vector<4x2x128xi32>
    %22 = arith.cmpi eq, %20, %21 : vector<4x2x128xi32>
    %23 = arith.extui %22 : vector<4x2x128xi1> to vector<4x2x128xi32>
    %24 = arith.sitofp %23 : vector<4x2x128xi32> to vector<4x2x128xf32>
    %cst_9 = arith.constant 0.000000e+00 : f32
    %25 = vector.broadcast %cst_9 : f32 to vector<4x2x128xf32>
    %26 = arith.select %22, %17, %25 : vector<4x2x128xi1>, vector<4x2x128xf32>
    %27 = arith.mulf %17, %17 : vector<4x2x128xf32>
    %c0_i32 = arith.constant 0 : i32
    %28 = arith.cmpi eq, %arg2, %c0_i32 : i32
    %29 = arith.extui %28 : i1 to i32
    %c0_i32_10 = arith.constant 0 : i32
    %30 = arith.cmpi ne, %29, %c0_i32_10 : i32
    scf.if %30 {
      %cst_41 = arith.constant 0.000000e+00 : f32
      %49 = vector.broadcast %cst_41 : f32 to vector<4x2x128xf32>
      %c0_42 = arith.constant 0 : index
      %c0_43 = arith.constant 0 : index
      %c0_44 = arith.constant 0 : index
      %c0_45 = arith.constant 0 : index
      %c0_46 = arith.constant 0 : index
      %50 = vector.load %arg5[%c0_42, %c0_43, %c0_44, %c0_45, %c0_46] : memref<1x1x4x2x128xf32, #tpu.memory_space<vmem>>, vector<1x1x4x2x128xf32>
      %51 = vector.shape_cast %50 : vector<1x1x4x2x128xf32> to vector<4x2x128xf32>
      %52 = vector.shape_cast %49 : vector<4x2x128xf32> to vector<1x1x4x2x128xf32>
      tpu.vector_store %arg5[%c0_42, %c0_43, %c0_44, %c0_45, %c0_46], %52 {strides = array<i32>} : memref<1x1x4x2x128xf32, #tpu.memory_space<vmem>>, vector<1x1x4x2x128xf32>,
      %cst_47 = arith.constant 0.000000e+00 : f32
      %53 = vector.broadcast %cst_47 : f32 to vector<4x2x128xf32>
      %c0_48 = arith.constant 0 : index
      %c0_49 = arith.constant 0 : index
      %c0_50 = arith.constant 0 : index
      %c0_51 = arith.constant 0 : index
      %c0_52 = arith.constant 0 : index
      %54 = vector.load %arg6[%c0_48, %c0_49, %c0_50, %c0_51, %c0_52] : memref<1x1x4x2x128xf32, #tpu.memory_space<vmem>>, vector<1x1x4x2x128xf32>
      %55 = vector.shape_cast %54 : vector<1x1x4x2x128xf32> to vector<4x2x128xf32>
      %56 = vector.shape_cast %53 : vector<4x2x128xf32> to vector<1x1x4x2x128xf32>
      tpu.vector_store %arg6[%c0_48, %c0_49, %c0_50, %c0_51, %c0_52], %56 {strides = array<i32>} : memref<1x1x4x2x128xf32, #tpu.memory_space<vmem>>, vector<1x1x4x2x128xf32>,
      %cst_53 = arith.constant 0.000000e+00 : f32
      %57 = vector.broadcast %cst_53 : f32 to vector<4x2x128xf32>
      %c0_54 = arith.constant 0 : index
      %c0_55 = arith.constant 0 : index
      %c0_56 = arith.constant 0 : index
      %c0_57 = arith.constant 0 : index
      %c0_58 = arith.constant 0 : index
      %58 = vector.load %arg7[%c0_54, %c0_55, %c0_56, %c0_57, %c0_58] : memref<1x1x4x2x128xf32, #tpu.memory_space<vmem>>, vector<1x1x4x2x128xf32>
      %59 = vector.shape_cast %58 : vector<1x1x4x2x128xf32> to vector<4x2x128xf32>
      %60 = vector.shape_cast %57 : vector<4x2x128xf32> to vector<1x1x4x2x128xf32>
      tpu.vector_store %arg7[%c0_54, %c0_55, %c0_56, %c0_57, %c0_58], %60 {strides = array<i32>} : memref<1x1x4x2x128xf32, #tpu.memory_space<vmem>>, vector<1x1x4x2x128xf32>,
    } else {
    }
    %c0_11 = arith.constant 0 : index
    %c0_12 = arith.constant 0 : index
    %c0_13 = arith.constant 0 : index
    %c0_14 = arith.constant 0 : index
    %c0_15 = arith.constant 0 : index
    %31 = vector.load %arg5[%c0_11, %c0_12, %c0_13, %c0_14, %c0_15] : memref<1x1x4x2x128xf32, #tpu.memory_space<vmem>>, vector<1x1x4x2x128xf32>
    %32 = vector.shape_cast %31 : vector<1x1x4x2x128xf32> to vector<4x2x128xf32>
    %33 = arith.addf %32, %26 : vector<4x2x128xf32>
    %c0_16 = arith.constant 0 : index
    %c0_17 = arith.constant 0 : index
    %c0_18 = arith.constant 0 : index
    %c0_19 = arith.constant 0 : index
    %c0_20 = arith.constant 0 : index
    %34 = vector.load %arg5[%c0_16, %c0_17, %c0_18, %c0_19, %c0_20] : memref<1x1x4x2x128xf32, #tpu.memory_space<vmem>>, vector<1x1x4x2x128xf32>
    %35 = vector.shape_cast %34 : vector<1x1x4x2x128xf32> to vector<4x2x128xf32>
    %36 = vector.shape_cast %33 : vector<4x2x128xf32> to vector<1x1x4x2x128xf32>
    tpu.vector_store %arg5[%c0_16, %c0_17, %c0_18, %c0_19, %c0_20], %36 {strides = array<i32>} : memref<1x1x4x2x128xf32, #tpu.memory_space<vmem>>, vector<1x1x4x2x128xf32>,
    %c0_21 = arith.constant 0 : index
    %c0_22 = arith.constant 0 : index
    %c0_23 = arith.constant 0 : index
    %c0_24 = arith.constant 0 : index
    %c0_25 = arith.constant 0 : index
    %37 = vector.load %arg6[%c0_21, %c0_22, %c0_23, %c0_24, %c0_25] : memref<1x1x4x2x128xf32, #tpu.memory_space<vmem>>, vector<1x1x4x2x128xf32>
    %38 = vector.shape_cast %37 : vector<1x1x4x2x128xf32> to vector<4x2x128xf32>
    %39 = arith.addf %38, %24 : vector<4x2x128xf32>
    %c0_26 = arith.constant 0 : index
    %c0_27 = arith.constant 0 : index
    %c0_28 = arith.constant 0 : index
    %c0_29 = arith.constant 0 : index
    %c0_30 = arith.constant 0 : index
    %40 = vector.load %arg6[%c0_26, %c0_27, %c0_28, %c0_29, %c0_30] : memref<1x1x4x2x128xf32, #tpu.memory_space<vmem>>, vector<1x1x4x2x128xf32>
    %41 = vector.shape_cast %40 : vector<1x1x4x2x128xf32> to vector<4x2x128xf32>
    %42 = vector.shape_cast %39 : vector<4x2x128xf32> to vector<1x1x4x2x128xf32>
    tpu.vector_store %arg6[%c0_26, %c0_27, %c0_28, %c0_29, %c0_30], %42 {strides = array<i32>} : memref<1x1x4x2x128xf32, #tpu.memory_space<vmem>>, vector<1x1x4x2x128xf32>,
    %c0_31 = arith.constant 0 : index
    %c0_32 = arith.constant 0 : index
    %c0_33 = arith.constant 0 : index
    %c0_34 = arith.constant 0 : index
    %c0_35 = arith.constant 0 : index
    %43 = vector.load %arg7[%c0_31, %c0_32, %c0_33, %c0_34, %c0_35] : memref<1x1x4x2x128xf32, #tpu.memory_space<vmem>>, vector<1x1x4x2x128xf32>
    %44 = vector.shape_cast %43 : vector<1x1x4x2x128xf32> to vector<4x2x128xf32>
    %45 = arith.addf %44, %27 : vector<4x2x128xf32>
    %c0_36 = arith.constant 0 : index
    %c0_37 = arith.constant 0 : index
    %c0_38 = arith.constant 0 : index
    %c0_39 = arith.constant 0 : index
    %c0_40 = arith.constant 0 : index
    %46 = vector.load %arg7[%c0_36, %c0_37, %c0_38, %c0_39, %c0_40] : memref<1x1x4x2x128xf32, #tpu.memory_space<vmem>>, vector<1x1x4x2x128xf32>
    %47 = vector.shape_cast %46 : vector<1x1x4x2x128xf32> to vector<4x2x128xf32>
    %48 = vector.shape_cast %45 : vector<4x2x128xf32> to vector<1x1x4x2x128xf32>
    tpu.vector_store %arg7[%c0_36, %c0_37, %c0_38, %c0_39, %c0_40], %48 {strides = array<i32>} : memref<1x1x4x2x128xf32, #tpu.memory_space<vmem>>, vector<1x1x4x2x128xf32>,
    return
  }
  func.func @transform_0(%arg0: i32, %arg1: i32, %arg2: i32) -> (i32, i32, i32, i32) {
    %c1_i32 = arith.constant 1 : i32
    %0 = arith.muli %arg1, %c1_i32 : i32
    %1 = arith.addi %0, %arg2 : i32
    %c0_i32 = arith.constant 0 : i32
    %2 = arith.minsi %1, %c0_i32 : i32
    %c0_i32_0 = arith.constant 0 : i32
    %c0_i32_1 = arith.constant 0 : i32
    %c0_i32_2 = arith.constant 0 : i32
    return %arg0, %c0_i32_0, %2, %c0_i32_1 : i32, i32, i32, i32
  }
  func.func @transform_1(%arg0: i32, %arg1: i32, %arg2: i32) -> (i32, i32, i32, i32) {
    %c1_i32 = arith.constant 1 : i32
    %0 = arith.muli %arg1, %c1_i32 : i32
    %1 = arith.addi %0, %arg2 : i32
    %c0_i32 = arith.constant 0 : i32
    %2 = arith.minsi %1, %c0_i32 : i32
    %c0_i32_0 = arith.constant 0 : i32
    %c0_i32_1 = arith.constant 0 : i32
    %c0_i32_2 = arith.constant 0 : i32
    return %arg0, %c0_i32_0, %2, %c0_i32_1 : i32, i32, i32, i32
  }
  func.func @transform_2(%arg0: i32, %arg1: i32, %arg2: i32) -> (i32, i32, i32, i32, i32) {
    %c0_i32 = arith.constant 0 : i32
    %c0_i32_0 = arith.constant 0 : i32
    %c0_i32_1 = arith.constant 0 : i32
    %c0_i32_2 = arith.constant 0 : i32
    return %arg0, %arg1, %c0_i32, %c0_i32_0, %c0_i32_1 : i32, i32, i32, i32, i32
  }
  func.func @transform_3(%arg0: i32, %arg1: i32, %arg2: i32) -> (i32, i32, i32, i32, i32) {
    %c0_i32 = arith.constant 0 : i32
    %c0_i32_0 = arith.constant 0 : i32
    %c0_i32_1 = arith.constant 0 : i32
    %c0_i32_2 = arith.constant 0 : i32
    return %arg0, %arg1, %c0_i32, %c0_i32_0, %c0_i32_1 : i32, i32, i32, i32, i32
  }
  func.func @transform_4(%arg0: i32, %arg1: i32, %arg2: i32) -> (i32, i32, i32, i32, i32) {
    %c0_i32 = arith.constant 0 : i32
    %c0_i32_0 = arith.constant 0 : i32
    %c0_i32_1 = arith.constant 0 : i32
    %c0_i32_2 = arith.constant 0 : i32
    return %arg0, %arg1, %c0_i32, %c0_i32_0, %c0_i32_1 : i32, i32, i32, i32, i32
  }
}

</mosaic_0001>

<llo_original>
// kernel: dice_loss_forward.1
$region0: #{dice_loss_forward.1}
  #allocation0 [shape = 'u32[]', space=smem, size = 0x4, offset = 0x4, fixed_abs, tag = 'smem constant byte address 0x4 - core index']
  #allocation1 [shape = 'u32[144,128]{1,0:T(1,128)}', space=vmem, size = 0x12000, scoped, tag = 'internal scratch']
  %s0 = inlined_call_operand.vmem [shape: f32[2,4,2,128], index: 0, kind: input, shape index: {}]
  %s1 = inlined_call_operand.vmem [shape: s32[2,1,2,128], index: 1, kind: input, shape index: {}]
  %s2 = inlined_call_operand.vmem [shape: f32[2,1,4,2,128], index: 2, kind: output, shape index: {0}]
  %s3 = inlined_call_operand.vmem [shape: f32[2,1,4,2,128], index: 3, kind: output, shape index: {1}]
  %s4 = inlined_call_operand.vmem [shape: f32[2,1,4,2,128], index: 4, kind: output, shape index: {2}]
  %5 = xla_tuple %s2, %s3, %s4
  %s6 = sld [smem:[#allocation0]]
  $region61: #{dice_loss_forward.1} parent=0
    _
  %s8 = ssub.s32 1, %s6
  %s9 = scalar_select 0, %s8, %s6
  loop: start=0, step=1, limit=4
  $region2: #{dice_loss_forward.1} parent=0 // loop_pre_header
    _
  $region3: #{dice_loss_forward.1} parent=0 // loop_header
    %s11 = sphi 0, %s15
    %p12 = scmp.ge.s32.totalorder %s11, 4
    %s18 = sphi 0, %s37
    %s19 = sphi 0, %s33
    %s20 = sphi 0, %s29
    %s21 = sphi 0, %s18
    %s22 = sphi 0, %s19
    %s23 = sphi 0, %s20
    %s24 = sphi 0, %s21
    %s25 = sphi 0, %s22
    %s26 = sphi 0, %s23
    %s48 = sphi 0, %s50
    %s51 = sphi 0, %s48
    %s52 = sphi 0, %s51
    %s68 = sphi 0, %s52
    %s82 = sphi 0, %s84
    %s85 = sphi 0, %s82
    %s86 = sphi 0, %s85
    %s102 = sphi 0, %s86
    %s110 = sphi 0, %s112
    %s113 = sphi 0, %s110
    %s114 = sphi 0, %s113
    %s130 = sphi 0, %s114
    %s138 = sphi 0, %s140
    %s141 = sphi 0, %s138
    %s142 = sphi 0, %s141
    %s158 = sphi 0, %s142
    %s166 = sphi 0, %s168
    %s169 = sphi 0, %s166
    %s170 = sphi 0, %s169
    %s186 = sphi 0, %s170
  $region4: #{dice_loss_forward.1} parent=0 // loop_header_branch
    %14 = sbr.rel (%p12) target = $region8
  $region5: #{dice_loss_forward.1} parent=0 // loop_body
    %s16 = ssub.s32 %s11, 1
    %s17 = ssub.s32 %s11, 2
    %s27 = sadd.s32 1, %s20
    %p28 = scmp.ge.s32.totalorder %s27, 1
    %s29 = scalar_select %p28, 0, %s27
    %s30 = sadd.s32 1, %s19
    %s31 = scalar_select %p28, %s30, %s19
    %p32 = scmp.ge.s32.totalorder %s31, 1
    %s33 = scalar_select %p32, 0, %s31
    %s34 = sadd.s32 1, %s18
    %s35 = scalar_select %p32, %s34, %s18
    %p36 = scmp.ge.s32.totalorder %s35, 2
    %s37 = scalar_select %p36, 0, %s35
    %s38 = sadd.s32 %s19, %s20
    %p39 = scmp.lt.s32.totalorder %s38, 0
    %s40 = scalar_select %p39, %s38, 0
    %s41 = sadd.s32 %s33, %s29
    %p42 = scmp.lt.s32.totalorder %s41, 0
    %s43 = scalar_select %p42, %s41, 0
    %s44 = ssub.s32 %s18, %s37
    %s45 = ssub.s32 %s40, %s43
    %s46 = sor.u32 %s44, %s45
    %p47 = scmp.eq.s32.totalorder %s46, 0
    %s49 = sadd.s32 %s48, 1
    %s50 = scalar_select %p47, %s48, %s49
    %p53 = pneg %p47
    %p54 = scmp.eq.s32.totalorder %s11, 1
    %p55 = por %p53, %p54
    %p56 = scmp.ne.s32.totalorder %s48, %s51
    %p57 = scmp.eq.s32.totalorder %s11, 0
    %p58 = por %p56, %p57
    %p59 = scmp.ne.s32.totalorder %s48, %s51
    %p60 = scmp.eq.s32.totalorder %s16, 1
    %p61 = por %p59, %p60
    %p62 = scmp.ne.s32.totalorder %s51, %s52
    %p63 = scmp.eq.s32.totalorder %s16, 0
    %p64 = por %p62, %p63
    %p65 = scmp.ne.s32.totalorder %s51, %s52
    %p66 = scmp.eq.s32.totalorder %s17, 1
    %p67 = por %p65, %p66
    %p69 = scmp.ne.s32.totalorder %s52, %s68
    %p70 = scmp.eq.s32.totalorder %s17, 0
    %p71 = por %p69, %p70
    %s72 = sadd.s32 %s19, %s20
    %p73 = scmp.lt.s32.totalorder %s72, 0
    %s74 = scalar_select %p73, %s72, 0
    %s75 = sadd.s32 %s33, %s29
    %p76 = scmp.lt.s32.totalorder %s75, 0
    %s77 = scalar_select %p76, %s75, 0
    %s78 = ssub.s32 %s18, %s37
    %s79 = ssub.s32 %s74, %s77
    %s80 = sor.u32 %s78, %s79
    %p81 = scmp.eq.s32.totalorder %s80, 0
    %s83 = sadd.s32 %s82, 1
    %s84 = scalar_select %p81, %s82, %s83
    %p87 = pneg %p81
    %p88 = scmp.eq.s32.totalorder %s11, 1
    %p89 = por %p87, %p88
    %p90 = scmp.ne.s32.totalorder %s82, %s85
    %p91 = scmp.eq.s32.totalorder %s11, 0
    %p92 = por %p90, %p91
    %p93 = scmp.ne.s32.totalorder %s82, %s85
    %p94 = scmp.eq.s32.totalorder %s16, 1
    %p95 = por %p93, %p94
    %p96 = scmp.ne.s32.totalorder %s85, %s86
    %p97 = scmp.eq.s32.totalorder %s16, 0
    %p98 = por %p96, %p97
    %p99 = scmp.ne.s32.totalorder %s85, %s86
    %p100 = scmp.eq.s32.totalorder %s17, 1
    %p101 = por %p99, %p100
    %p103 = scmp.ne.s32.totalorder %s86, %s102
    %p104 = scmp.eq.s32.totalorder %s17, 0
    %p105 = por %p103, %p104
    %s106 = ssub.s32 %s18, %s37
    %s107 = ssub.s32 %s19, %s33
    %s108 = sor.u32 %s106, %s107
    %p109 = scmp.eq.s32.totalorder %s108, 0
    %s111 = sadd.s32 %s110, 1
    %s112 = scalar_select %p109, %s110, %s111
    %p115 = pneg %p109
    %p116 = scmp.eq.s32.totalorder %s11, 1
    %p117 = por %p115, %p116
    %p118 = scmp.ne.s32.totalorder %s110, %s113
    %p119 = scmp.eq.s32.totalorder %s11, 0
    %p120 = por %p118, %p119
    %p121 = scmp.ne.s32.totalorder %s110, %s113
    %p122 = scmp.eq.s32.totalorder %s16, 1
    %p123 = por %p121, %p122
    %p124 = scmp.ne.s32.totalorder %s113, %s114
    %p125 = scmp.eq.s32.totalorder %s16, 0
    %p126 = por %p124, %p125
    %p127 = scmp.ne.s32.totalorder %s113, %s114
    %p128 = scmp.eq.s32.totalorder %s17, 1
    %p129 = por %p127, %p128
    %p131 = scmp.ne.s32.totalorder %s114, %s130
    %p132 = scmp.eq.s32.totalorder %s17, 0
    %p133 = por %p131, %p132
    %s134 = ssub.s32 %s18, %s37
    %s135 = ssub.s32 %s19, %s33
    %s136 = sor.u32 %s134, %s135
    %p137 = scmp.eq.s32.totalorder %s136, 0
    %s139 = sadd.s32 %s138, 1
    %s140 = scalar_select %p137, %s138, %s139
    %p143 = pneg %p137
    %p144 = scmp.eq.s32.totalorder %s11, 1
    %p145 = por %p143, %p144
    %p146 = scmp.ne.s32.totalorder %s138, %s141
    %p147 = scmp.eq.s32.totalorder %s11, 0
    %p148 = por %p146, %p147
    %p149 = scmp.ne.s32.totalorder %s138, %s141
    %p150 = scmp.eq.s32.totalorder %s16, 1
    %p151 = por %p149, %p150
    %p152 = scmp.ne.s32.totalorder %s141, %s142
    %p153 = scmp.eq.s32.totalorder %s16, 0
    %p154 = por %p152, %p153
    %p155 = scmp.ne.s32.totalorder %s141, %s142
    %p156 = scmp.eq.s32.totalorder %s17, 1
    %p157 = por %p155, %p156
    %p159 = scmp.ne.s32.totalorder %s142, %s158
    %p160 = scmp.eq.s32.totalorder %s17, 0
    %p161 = por %p159, %p160
    %s162 = ssub.s32 %s18, %s37
    %s163 = ssub.s32 %s19, %s33
    %s164 = sor.u32 %s162, %s163
    %p165 = scmp.eq.s32.totalorder %s164, 0
    %s167 = sadd.s32 %s166, 1
    %s168 = scalar_select %p165, %s166, %s167
    %p171 = pneg %p165
    %p172 = scmp.eq.s32.totalorder %s11, 1
    %p173 = por %p171, %p172
    %p174 = scmp.ne.s32.totalorder %s166, %s169
    %p175 = scmp.eq.s32.totalorder %s11, 0
    %p176 = por %p174, %p175
    %p177 = scmp.ne.s32.totalorder %s166, %s169
    %p178 = scmp.eq.s32.totalorder %s16, 1
    %p179 = por %p177, %p178
    %p180 = scmp.ne.s32.totalorder %s169, %s170
    %p181 = scmp.eq.s32.totalorder %s16, 0
    %p182 = por %p180, %p181
    %p183 = scmp.ne.s32.totalorder %s169, %s170
    %p184 = scmp.eq.s32.totalorder %s17, 1
    %p185 = por %p183, %p184
    %p187 = scmp.ne.s32.totalorder %s170, %s186
    %p188 = scmp.eq.s32.totalorder %s17, 0
    %p189 = por %p187, %p188
    %p190 = scmp.le.s32.totalorder 1, %s11
    %p191 = scmp.lt.s32.totalorder %s11, 3
    %p192 = pnand %p190, %p191
    %p193 = pneg %p192
    // Predicated region
    $region9: #{dice_loss_forward.1} parent=5 // pred_check
      _
    $region10: #{dice_loss_forward.1} parent=5 // pred_check_branch
      %195 = sbr.rel (%p192) target = $region12
    $region11: #{dice_loss_forward.1} parent=5 // pred_region
      %s196 = ssub.s32 %s11, 1
    $region12: #{dice_loss_forward.1} parent=5 // pred_fallthru
      _
    %p197 = scmp.lt.s32.totalorder %s11, 2
    // Predicated region
    $region13: #{dice_loss_forward.1} parent=5 // pred_check
      %p198 = pneg %p197
    $region14: #{dice_loss_forward.1} parent=5 // pred_check_branch
      %200 = sbr.rel (%p198) target = $region16
    $region15: #{dice_loss_forward.1} parent=5 // pred_region
      // Predicated region
      $region17: #{dice_loss_forward.1} parent=15 // pred_check
        %p201 = pneg %p58
      $region18: #{dice_loss_forward.1} parent=15 // pred_check_branch
        %203 = sbr.rel (%p201) target = $region20
      $region19: #{dice_loss_forward.1} parent=15 // pred_region
        %s204 = sadd.s32 %s19, %s20
        %p205 = scmp.lt.s32.totalorder %s204, 0
        %s206 = scalar_select %p205, %s204, 0
        %p207 = scmp.lt.s32.totalorder %s18, 1
        %s208 = scalar_select %p207, %s18, 1
        %p209 = scmp.lt.s32.totalorder %s206, 0
        %s210 = scalar_select %p209, %s206, 0
        %s211 = smul.addr %s208, 4
        %s212 = sadd.s32 %s210, %s211
        %s213 = smul.addr %s212, 2
        %s214 = scalar_lea.vmem %s0, %s213
        %s215 = sadd.s32 %s19, %s20
        %p216 = scmp.lt.s32.totalorder %s215, 0
        %s217 = scalar_select %p216, %s215, 0
      $region20: #{dice_loss_forward.1} parent=15 // pred_fallthru
        _
      // Predicated region
      $region21: #{dice_loss_forward.1} parent=15 // pred_check
        %p218 = pneg %p92
      $region22: #{dice_loss_forward.1} parent=15 // pred_check_branch
        %220 = sbr.rel (%p218) target = $region24
      $region23: #{dice_loss_forward.1} parent=15 // pred_region
        %s221 = sadd.s32 %s19, %s20
        %p222 = scmp.lt.s32.totalorder %s221, 0
        %s223 = scalar_select %p222, %s221, 0
        %p224 = scmp.lt.s32.totalorder %s18, 1
        %s225 = scalar_select %p224, %s18, 1
        %p226 = scmp.lt.s32.totalorder %s223, 0
        %s227 = scalar_select %p226, %s223, 0
        %s228 = sadd.s32 %s227, %s225
        %s229 = smul.addr %s228, 2
        %s230 = scalar_lea.vmem %s1, %s229
        %s231 = sadd.s32 %s19, %s20
        %p232 = scmp.lt.s32.totalorder %s231, 0
        %s233 = scalar_select %p232, %s231, 0
      $region24: #{dice_loss_forward.1} parent=15 // pred_fallthru
        _
    $region16: #{dice_loss_forward.1} parent=5 // pred_fallthru
      _
    %p234 = scmp.le.s32.totalorder 1, %s11
    %p235 = scmp.lt.s32.totalorder %s11, 3
    %p236 = pnand %p234, %p235
    %p237 = pneg %p236
    // Predicated region
    $region25: #{dice_loss_forward.1} parent=5 // pred_check
      _
    $region26: #{dice_loss_forward.1} parent=5 // pred_check_branch
      %239 = sbr.rel (%p236) target = $region28
    $region27: #{dice_loss_forward.1} parent=5 // pred_region
      %s240 = ssub.s32 %s11, 1
      %s241 = sadd.s32 %s22, %s23
      %p242 = scmp.lt.s32.totalorder %s241, 0
      %s243 = scalar_select %p242, %s241, 0
      %p244 = scmp.lt.s32.totalorder %s21, 1
      %s245 = scalar_select %p244, %s21, 1
      %p246 = scmp.lt.s32.totalorder %s243, 0
      %s247 = scalar_select %p246, %s243, 0
      %s248 = smul.addr %s245, 4
      %s249 = sadd.s32 %s247, %s248
      %s250 = smul.addr %s249, 2
      %s251 = scalar_lea.vmem %s0, %s250
      %p252 = pneg %p64
      %p253 = pneg %p61
      %s254 = sadd.s32 %s22, %s23
      %p255 = scmp.lt.s32.totalorder %s254, 0
      %s256 = scalar_select %p255, %s254, 0
      %p257 = scmp.lt.s32.totalorder %s21, 1
      %s258 = scalar_select %p257, %s21, 1
      %p259 = scmp.lt.s32.totalorder %s256, 0
      %s260 = scalar_select %p259, %s256, 0
      %s261 = sadd.s32 %s260, %s258
      %s262 = smul.addr %s261, 2
      %s263 = scalar_lea.vmem %s1, %s262
      %p264 = pneg %p98
      %p265 = pneg %p95
      %p266 = pneg %p126
      %p267 = pneg %p123
      %p268 = scmp.lt.s32.totalorder %s21, 1
      %s269 = scalar_select %p268, %s21, 1
      %p270 = scmp.lt.s32.totalorder %s22, 0
      %s271 = scalar_select %p270, %s22, 0
      %s272 = smul.addr %s271, 4
      %s273 = smul.addr %s269, 4
      %s274 = sadd.s32 %s272, %s273
      %s275 = smul.addr %s274, 2
      %s276 = scalar_lea.vmem %s2, %s275
      %p277 = pneg %p154
      %p278 = pneg %p151
      %p279 = scmp.lt.s32.totalorder %s21, 1
      %s280 = scalar_select %p279, %s21, 1
      %p281 = scmp.lt.s32.totalorder %s22, 0
      %s282 = scalar_select %p281, %s22, 0
      %s283 = smul.addr %s282, 4
      %s284 = smul.addr %s280, 4
      %s285 = sadd.s32 %s283, %s284
      %s286 = smul.addr %s285, 2
      %s287 = scalar_lea.vmem %s3, %s286
      %p288 = pneg %p182
      %p289 = pneg %p179
      %p290 = scmp.lt.s32.totalorder %s21, 1
      %s291 = scalar_select %p290, %s21, 1
      %p292 = scmp.lt.s32.totalorder %s22, 0
      %s293 = scalar_select %p292, %s22, 0
      %s294 = smul.addr %s293, 4
      %s295 = smul.addr %s291, 4
      %s296 = sadd.s32 %s294, %s295
      %s297 = smul.addr %s296, 2
      %s298 = scalar_lea.vmem %s4, %s297
      %s299 = sadd.s32 %s22, %s23
      %p300 = scmp.lt.s32.totalorder %s299, 0
      %s301 = scalar_select %p300, %s299, 0
      %p302 = scmp.lt.s32.totalorder %s21, 1
      %s303 = scalar_select %p302, %s21, 1
      %p304 = scmp.lt.s32.totalorder %s301, 0
      %s305 = scalar_select %p304, %s301, 0
      %s306 = smul.addr %s303, 4
      %s307 = sadd.s32 %s305, %s306
      %s308 = smul.addr %s307, 2
      %s309 = scalar_lea.vmem %s0, %s308
      %s310 = sadd.s32 %s22, %s23
      %p311 = scmp.lt.s32.totalorder %s310, 0
      %s312 = scalar_select %p311, %s310, 0
      %s313 = sadd.s32 %s22, %s23
      %p314 = scmp.lt.s32.totalorder %s313, 0
      %s315 = scalar_select %p314, %s313, 0
      %p316 = scmp.lt.s32.totalorder %s21, 1
      %s317 = scalar_select %p316, %s21, 1
      %p318 = scmp.lt.s32.totalorder %s315, 0
      %s319 = scalar_select %p318, %s315, 0
      %s320 = sadd.s32 %s319, %s317
      %s321 = smul.addr %s320, 2
      %s322 = scalar_lea.vmem %s1, %s321
      %s323 = sadd.s32 %s22, %s23
      %p324 = scmp.lt.s32.totalorder %s323, 0
      %s325 = scalar_select %p324, %s323, 0
      %p326 = scmp.lt.s32.totalorder %s21, 1
      %s327 = scalar_select %p326, %s21, 1
      %p328 = scmp.lt.s32.totalorder %s22, 0
      %s329 = scalar_select %p328, %s22, 0
      %s330 = smul.addr %s329, 4
      %s331 = smul.addr %s327, 4
      %s332 = sadd.s32 %s330, %s331
      %s333 = smul.addr %s332, 2
      %s334 = scalar_lea.vmem %s2, %s333
      %p335 = scmp.lt.s32.totalorder %s21, 1
      %s336 = scalar_select %p335, %s21, 1
      %p337 = scmp.lt.s32.totalorder %s22, 0
      %s338 = scalar_select %p337, %s22, 0
      %s339 = smul.addr %s338, 4
      %s340 = smul.addr %s336, 4
      %s341 = sadd.s32 %s339, %s340
      %s342 = smul.addr %s341, 2
      %s343 = scalar_lea.vmem %s3, %s342
      %p344 = scmp.lt.s32.totalorder %s21, 1
      %s345 = scalar_select %p344, %s21, 1
      %p346 = scmp.lt.s32.totalorder %s22, 0
      %s347 = scalar_select %p346, %s22, 0
      %s348 = smul.addr %s347, 4
      %s349 = smul.addr %s345, 4
      %s350 = sadd.s32 %s348, %s349
      %s351 = smul.addr %s350, 2
      %s352 = scalar_lea.vmem %s4, %s351
      %v353 = vld [vmem:[%s309] sm:$0x3]
      %v354 = vld [vmem:[%s309 + $0x2] sm:$0x3]
      %v355 = vld [vmem:[%s309 + $0x4] sm:$0x3]
      %v356 = vld [vmem:[%s309 + $0x6] sm:$0x3]
      %v357 = vld [vmem:[%s322] sm:$0x3]
      %vm358 = vcmask 1041408
      %v359 = vsel %vm358, %v353, -inf
      %v360 = vsel %vm358, %v354, -inf
      %v361 = vsel %vm358, %v355, -inf
      %v362 = vsel %vm358, %v356, -inf
      %v363 = vmax.f32 %v359, %v360
      %v364 = vmax.f32 %v361, %v362
      %v365 = vmax.f32 %v363, %v364
      %v366 = vsub.f32 %v353, %v365
      %v367 = vsub.f32 %v354, %v365
      %v368 = vsub.f32 %v355, %v365
      %v369 = vsub.f32 %v356, %v365
      %v370 = vmul.f32 %v366, 1.442695
      %v371 = vpow.pop %v370
      %v372 = vmul.f32 %v367, 1.442695
      %v373 = vpow.pop %v372
      %v374 = vmul.f32 %v368, 1.442695
      %v375 = vpow.pop %v374
      %v376 = vmul.f32 %v369, 1.442695
      %v377 = vpow.pop %v376
      %v378 = vsel %vm358, %v371, 0.0
      %v379 = vsel %vm358, %v373, 0.0
      %v380 = vadd.f32 %v378, %v379
      %v381 = vsel %vm358, %v375, 0.0
      %v382 = vadd.f32 %v380, %v381
      %v383 = vsel %vm358, %v377, 0.0
      %v384 = vadd.f32 %v382, %v383
      %v385 = vrcp.pop %v384
      %v386 = vmul.f32 %v384, %v385
      %v387 = vsub.f32 2.0, %v386
      %v388 = vmul.f32 %v385, %v387
      %v389 = vmul.f32 %v371, %v388
      %v390 = vmul.f32 %v373, %v388
      %v391 = vmul.f32 %v375, %v388
      %v392 = vmul.f32 %v377, %v388
      %vm393 = vcmp.eq.s32.totalorder %v357, 0
      %vm394 = vcmp.eq.s32.totalorder %v357, 1
      %vm395 = vcmp.eq.s32.totalorder %v357, 2
      %vm396 = vcmp.eq.s32.totalorder %v357, 3
      %v397 = vsel %vm393, 1, 0
      %v398 = vsel %vm394, 1, 0
      %v399 = vsel %vm395, 1, 0
      %v400 = vsel %vm396, 1, 0
      %v401 = vcvt.s32.f32 %v397
      %v402 = vcvt.s32.f32 %v398
      %v403 = vcvt.s32.f32 %v399
      %v404 = vcvt.s32.f32 %v400
      %v405 = vsel %vm393, %v389, 0.0
      %v406 = vsel %vm394, %v390, 0.0
      %v407 = vsel %vm395, %v391, 0.0
      %v408 = vsel %vm396, %v392, 0.0
      %v409 = vmul.f32 %v389, %v389
      %v410 = vmul.f32 %v390, %v390
      %v411 = vmul.f32 %v391, %v391
      %v412 = vmul.f32 %v392, %v392
      %p413 = scmp.eq.s32.totalorder %s23, 0
      // Predicated region
      $region29: #{dice_loss_forward.1} parent=27 // pred_check
        %p414 = pneg %p413
      $region30: #{dice_loss_forward.1} parent=27 // pred_check_branch
        %416 = sbr.rel (%p414) target = $region32
      $region31: #{dice_loss_forward.1} parent=27 // pred_region
        %417 = vst [vmem:[%s334] sm:$0x3] 0.0
        %418 = vst [vmem:[%s334 + $0x2] sm:$0x3] 0.0
        %419 = vst [vmem:[%s334 + $0x4] sm:$0x3] 0.0
        %420 = vst [vmem:[%s334 + $0x6] sm:$0x3] 0.0
        %421 = vst [vmem:[%s343] sm:$0x3] 0.0
        %422 = vst [vmem:[%s343 + $0x2] sm:$0x3] 0.0
        %423 = vst [vmem:[%s343 + $0x4] sm:$0x3] 0.0
        %424 = vst [vmem:[%s343 + $0x6] sm:$0x3] 0.0
        %425 = vst [vmem:[%s352] sm:$0x3] 0.0
        %426 = vst [vmem:[%s352 + $0x2] sm:$0x3] 0.0
        %427 = vst [vmem:[%s352 + $0x4] sm:$0x3] 0.0
        %428 = vst [vmem:[%s352 + $0x6] sm:$0x3] 0.0
      $region32: #{dice_loss_forward.1} parent=27 // pred_fallthru
        _
      %v429 = vld [vmem:[%s334] sm:$0x3]
      %v430 = vld [vmem:[%s334 + $0x2] sm:$0x3]
      %v431 = vld [vmem:[%s334 + $0x4] sm:$0x3]
      %v432 = vld [vmem:[%s334 + $0x6] sm:$0x3]
      %v433 = vadd.f32 %v429, %v405
      %v434 = vadd.f32 %v430, %v406
      %v435 = vadd.f32 %v431, %v407
      %v436 = vadd.f32 %v432, %v408
      %437 = vst [vmem:[%s334] sm:$0x3] %v433
      %438 = vst [vmem:[%s334 + $0x2] sm:$0x3] %v434
      %439 = vst [vmem:[%s334 + $0x4] sm:$0x3] %v435
      %440 = vst [vmem:[%s334 + $0x6] sm:$0x3] %v436
      %v441 = vld [vmem:[%s343] sm:$0x3]
      %v442 = vld [vmem:[%s343 + $0x2] sm:$0x3]
      %v443 = vld [vmem:[%s343 + $0x4] sm:$0x3]
      %v444 = vld [vmem:[%s343 + $0x6] sm:$0x3]
      %v445 = vadd.f32 %v441, %v401
      %v446 = vadd.f32 %v442, %v402
      %v447 = vadd.f32 %v443, %v403
      %v448 = vadd.f32 %v444, %v404
      %449 = vst [vmem:[%s343] sm:$0x3] %v445
      %450 = vst [vmem:[%s343 + $0x2] sm:$0x3] %v446
      %451 = vst [vmem:[%s343 + $0x4] sm:$0x3] %v447
      %452 = vst [vmem:[%s343 + $0x6] sm:$0x3] %v448
      %v453 = vld [vmem:[%s352] sm:$0x3]
      %v454 = vld [vmem:[%s352 + $0x2] sm:$0x3]
      %v455 = vld [vmem:[%s352 + $0x4] sm:$0x3]
      %v456 = vld [vmem:[%s352 + $0x6] sm:$0x3]
      %v457 = vadd.f32 %v453, %v409
      %v458 = vadd.f32 %v454, %v410
      %v459 = vadd.f32 %v455, %v411
      %v460 = vadd.f32 %v456, %v412
      %461 = vst [vmem:[%s352] sm:$0x3] %v457
      %462 = vst [vmem:[%s352 + $0x2] sm:$0x3] %v458
      %463 = vst [vmem:[%s352 + $0x4] sm:$0x3] %v459
      %464 = vst [vmem:[%s352 + $0x6] sm:$0x3] %v460
      %p465 = scmp.lt.s32.totalorder %s21, 1
      %s466 = scalar_select %p465, %s21, 1
      %p467 = scmp.lt.s32.totalorder %s22, 0
      %s468 = scalar_select %p467, %s22, 0
      %s469 = smul.addr %s468, 4
      %s470 = smul.addr %s466, 4
      %s471 = sadd.s32 %s469, %s470
      %s472 = smul.addr %s471, 2
      %s473 = scalar_lea.vmem %s2, %s472
      %p474 = scmp.lt.s32.totalorder %s21, 1
      %s475 = scalar_select %p474, %s21, 1
      %p476 = scmp.lt.s32.totalorder %s22, 0
      %s477 = scalar_select %p476, %s22, 0
      %s478 = smul.addr %s477, 4
      %s479 = smul.addr %s475, 4
      %s480 = sadd.s32 %s478, %s479
      %s481 = smul.addr %s480, 2
      %s482 = scalar_lea.vmem %s3, %s481
      %p483 = scmp.lt.s32.totalorder %s21, 1
      %s484 = scalar_select %p483, %s21, 1
      %p485 = scmp.lt.s32.totalorder %s22, 0
      %s486 = scalar_select %p485, %s22, 0
      %s487 = smul.addr %s486, 4
      %s488 = smul.addr %s484, 4
      %s489 = sadd.s32 %s487, %s488
      %s490 = smul.addr %s489, 2
      %s491 = scalar_lea.vmem %s4, %s490
      // Predicated region
      $region33: #{dice_loss_forward.1} parent=27 // pred_check
        %p492 = pneg %p123
      $region34: #{dice_loss_forward.1} parent=27 // pred_check_branch
        %494 = sbr.rel (%p492) target = $region36
      $region35: #{dice_loss_forward.1} parent=27 // pred_region
        _
      $region36: #{dice_loss_forward.1} parent=27 // pred_fallthru
        _
      // Predicated region
      $region37: #{dice_loss_forward.1} parent=27 // pred_check
        %p495 = pneg %p151
      $region38: #{dice_loss_forward.1} parent=27 // pred_check_branch
        %497 = sbr.rel (%p495) target = $region40
      $region39: #{dice_loss_forward.1} parent=27 // pred_region
        _
      $region40: #{dice_loss_forward.1} parent=27 // pred_fallthru
        _
      // Predicated region
      $region41: #{dice_loss_forward.1} parent=27 // pred_check
        %p498 = pneg %p179
      $region42: #{dice_loss_forward.1} parent=27 // pred_check_branch
        %500 = sbr.rel (%p498) target = $region44
      $region43: #{dice_loss_forward.1} parent=27 // pred_region
        _
      $region44: #{dice_loss_forward.1} parent=27 // pred_fallthru
        _
    $region28: #{dice_loss_forward.1} parent=5 // pred_fallthru
      _
    %p501 = scmp.le.s32.totalorder 2, %s11
    // Predicated region
    $region45: #{dice_loss_forward.1} parent=5 // pred_check
      %p502 = pneg %p501
    $region46: #{dice_loss_forward.1} parent=5 // pred_check_branch
      %504 = sbr.rel (%p502) target = $region48
    $region47: #{dice_loss_forward.1} parent=5 // pred_region
      %s505 = ssub.s32 %s11, 2
      // Predicated region
      $region49: #{dice_loss_forward.1} parent=47 // pred_check
        %p506 = pneg %p129
      $region50: #{dice_loss_forward.1} parent=47 // pred_check_branch
        %508 = sbr.rel (%p506) target = $region52
      $region51: #{dice_loss_forward.1} parent=47 // pred_region
        %p509 = scmp.lt.s32.totalorder %s24, 1
        %s510 = scalar_select %p509, %s24, 1
        %p511 = scmp.lt.s32.totalorder %s25, 0
        %s512 = scalar_select %p511, %s25, 0
        %s513 = smul.addr %s512, 4
        %s514 = smul.addr %s510, 4
        %s515 = sadd.s32 %s513, %s514
        %s516 = smul.addr %s515, 2
        %s517 = scalar_lea.vmem %s2, %s516
      $region52: #{dice_loss_forward.1} parent=47 // pred_fallthru
        _
      // Predicated region
      $region53: #{dice_loss_forward.1} parent=47 // pred_check
        %p518 = pneg %p157
      $region54: #{dice_loss_forward.1} parent=47 // pred_check_branch
        %520 = sbr.rel (%p518) target = $region56
      $region55: #{dice_loss_forward.1} parent=47 // pred_region
        %p521 = scmp.lt.s32.totalorder %s24, 1
        %s522 = scalar_select %p521, %s24, 1
        %p523 = scmp.lt.s32.totalorder %s25, 0
        %s524 = scalar_select %p523, %s25, 0
        %s525 = smul.addr %s524, 4
        %s526 = smul.addr %s522, 4
        %s527 = sadd.s32 %s525, %s526
        %s528 = smul.addr %s527, 2
        %s529 = scalar_lea.vmem %s3, %s528
      $region56: #{dice_loss_forward.1} parent=47 // pred_fallthru
        _
      // Predicated region
      $region57: #{dice_loss_forward.1} parent=47 // pred_check
        %p530 = pneg %p185
      $region58: #{dice_loss_forward.1} parent=47 // pred_check_branch
        %532 = sbr.rel (%p530) target = $region60
      $region59: #{dice_loss_forward.1} parent=47 // pred_region
        %p533 = scmp.lt.s32.totalorder %s24, 1
        %s534 = scalar_select %p533, %s24, 1
        %p535 = scmp.lt.s32.totalorder %s25, 0
        %s536 = scalar_select %p535, %s25, 0
        %s537 = smul.addr %s536, 4
        %s538 = smul.addr %s534, 4
        %s539 = sadd.s32 %s537, %s538
        %s540 = smul.addr %s539, 2
        %s541 = scalar_lea.vmem %s4, %s540
      $region60: #{dice_loss_forward.1} parent=47 // pred_fallthru
        _
    $region48: #{dice_loss_forward.1} parent=5 // pred_fallthru
      _
  $region6: #{dice_loss_forward.1} parent=0 // loop_footer
    %s15 = sadd.s32 1, %s11
  $region7: #{dice_loss_forward.1} parent=0 // loop_footer_branch
    %10 = sbr.rel target = $region3
  $region8: #{dice_loss_forward.1} parent=0 // loop_exit
    _

</llo_original>
